<compile_context>
chip_gen: v7x
topology: tpu7x:2x2x1
jax: 0.10.0
libtpu: 0.0.40
codegen_flags: <defaults>
</compile_context>

<pallas_src>
import jax
import jax.numpy as jnp
from jax.experimental import pallas as pl
from jax.experimental.pallas import tpu as pltpu


# ----------------------------------------------------------------------------
# Pallas kernel: identity passthrough (placeholder for the abstract forward).
# TODO(synk): BaseModel.forward raises NotImplementedError in PyTorch; derived
#             classes must supply the real compute — this kernel is only a
#             pass-through skeleton (note: the output index_map matches the
#             input index_map, which is the only pattern where input/output
#             aliasing is safe).
# ----------------------------------------------------------------------------
def _copy_kernel(x_ref, o_ref):
    o_ref[...] = x_ref[...]


def _min_sublane_rows(dtype) -> int:
    """Minimum legal row tile for the dtype (sub-32-bit dtypes pack sublanes)."""
    itemsize = jnp.dtype(dtype).itemsize
    return {4: 8, 2: 16, 1: 32}.get(itemsize, 8)


def _round_up(n: int, m: int) -> int:
    return ((n + m - 1) // m) * m


def _vmem_capacity_bytes() -> int:
    """Physical VMEM per TensorCore; conservative fallback if the query fails."""
    try:
        cap = int(pltpu.get_tpu_info().vmem_capacity_bytes)
        if cap > 0:
            return cap
    except Exception:
        pass
    return 64 << 20  # v7x-sized fallback: safe on every generation


def _plan_tiles(R: int, C: int, itemsize: int, sub: int, vmem_cap: int):
    """Pick (tile_r, tile_c) so 4 double-buffered tiles fit VMEM with headroom."""
    headroom = 8 << 20
    # Per-tile budget: (cap - headroom)/6 -> 4 live tiles use ~2/3 of the budget.
    tile_budget = max((vmem_cap - headroom) // 6, 1 << 20)

    slab_bytes = sub * max(C, 1) * itemsize
    if slab_bytes > tile_budget:
        # Very wide rows: split the lane dim in 128-multiples so every tile stays
        # bounded and stores remain unmasked; row tile = minimum sublane pack.
        tile_c = max((tile_budget // (sub * itemsize)) // 128 * 128, 128)
        tile_r = sub if R > sub else R
    else:
        tile_c = C
        rows_fit = (tile_budget // max(C * itemsize, 1)) // sub * sub
        rows_fit = max(rows_fit, sub)
        tile_r = R if rows_fit >= R else rows_fit

    # Megacore: on medium/large arrays make sure the row grid has >=2 (prefer 4)
    # steps so "parallel" can shard work across both v7x TensorCores.
    total_bytes = R * C * itemsize
    if tile_c == C and total_bytes >= (2 << 20) and R >= 2 * sub:
        want_steps = max(2, min(4, R // sub))
        cap_rows = _round_up(-(-R // want_steps), sub)  # ceil(R/steps) -> sublane pack
        if cap_rows < tile_r:
            tile_r = max(cap_rows, sub)

    return tile_r, tile_c


def pallas_identity(
    x: jax.Array,
    *,
    alias_input: bool = False,        # only set True if the caller donates x at the jit boundary
    min_bytes_for_kernel: int = 1 << 20,
    force_kernel: bool = False,
) -> jax.Array:
    """Lane-dense, VMEM-sized, generation-aware tiled identity copy."""
    if x.ndim == 0 or x.size == 0:
        return x

    itemsize = jnp.dtype(x.dtype).itemsize
    nbytes = x.size * itemsize
    if not force_kernel and nbytes < min_bytes_for_kernel:
        # A true identity needs zero HBM traffic; skip the kernel entirely for
        # small inputs (the kernel would be 100% launch/read/write overhead).
        return x

    # Flatten to 2-D keeping the last dim as the lane axis (lane-dense output).
    orig_shape = x.shape
    x2 = x.reshape(1, -1) if x.ndim == 1 else x.reshape(-1, x.shape[-1])
    R, C = x2.shape
    sub = _min_sublane_rows(x.dtype)

    vmem_cap = _vmem_capacity_bytes()
    tile_r, tile_c = _plan_tiles(R, C, itemsize, sub, vmem_cap)

    grid_r = pl.cdiv(R, tile_r)
    grid_c = pl.cdiv(C, tile_c)

    if grid_c == 1:
        grid = (grid_r,)
        in_spec = pl.BlockSpec((tile_r, tile_c), lambda i: (i, 0))
        out_spec = pl.BlockSpec((tile_r, tile_c), lambda i: (i, 0))
        dims = ("parallel",)
    else:
        grid = (grid_r, grid_c)
        in_spec = pl.BlockSpec((tile_r, tile_c), lambda i, j: (i, j))
        out_spec = pl.BlockSpec((tile_r, tile_c), lambda i, j: (i, j))
        dims = ("parallel", "parallel")

    # Scoped VMEM: double-buffered input + output tiles plus headroom, clamped
    # well below physical VMEM on every generation.
    tile_bytes = tile_r * tile_c * itemsize
    vmem_limit = int(min(4 * tile_bytes + (8 << 20), max(vmem_cap - (8 << 20), 16 << 20)))

    y2 = pl.pallas_call(
        _copy_kernel,
        out_shape=jax.ShapeDtypeStruct((R, C), x.dtype),
        grid=grid,
        in_specs=[in_spec],
        out_specs=out_spec,
        # Alias only when the input is actually donated; otherwise XLA inserts a
        # defensive full copy and the "zero-copy identity" costs 2x HBM traffic.
        input_output_aliases={0: 0} if alias_input else {},
        compiler_params=pltpu.CompilerParams(
            dimension_semantics=dims,
            vmem_limit_bytes=vmem_limit,
        ),
    )(x2)

    return y2.reshape(orig_shape)


# ----------------------------------------------------------------------------
# BaseModel equivalent (metadata container; no learnable parameters).
# ----------------------------------------------------------------------------
class BaseModel:
    def __init__(self, name: str, description: str, input_requires_mask: bool,
                 input_requires_numerics: bool, supports_variable_sequence_length: bool):
        self.name = name
        self.description = description
        self.input_requires_mask = input_requires_mask
        self.input_requires_numerics = input_requires_numerics
        self.supports_variable_sequence_length = supports_variable_sequence_length

    def forward(self, x: jax.Array) -> jax.Array:
        # TODO(synk): abstract in PyTorch (raises NotImplementedError). Derived
        # classes override this; the base class routes through the placeholder
        # identity (short-circuited for small inputs, Pallas copy otherwise).
        return pallas_identity(x)

    def __call__(self, x: jax.Array) -> jax.Array:
        return self.forward(x)

    def get_metadata(self):
        return {
            "name": self.name,
            "description": self.description,
            "input_requires_mask": self.input_requires_mask,
            "input_requires_numerics": self.input_requires_numerics,
            "supports_variable_sequence_length": self.supports_variable_sequence_length,
        }


if __name__ == "__main__":
    key = jax.random.PRNGKey(0)

    model = BaseModel(
        name="base_model",
        description="Abstract base model (identity placeholder kernel).",
        input_requires_mask=False,
        input_requires_numerics=True,
        supports_variable_sequence_length=True,
    )
    _ = model.get_metadata()  # metadata path exercised

    # 4-D activation slab (batch=2, channels=4, seq=16, hidden=32): exercises the
    # N-D flatten -> lane-dense 2-D copy -> reshape-back path, forcing the kernel.
    x = jax.random.normal(key, (2, 4, 16, 32), dtype=jnp.float32)
    x_host = jax.device_get(x)
    y = jax.block_until_ready(pallas_identity(x, force_kernel=True))
    assert y.shape == x_host.shape and y.dtype == jnp.float32
    assert bool(jnp.allclose(y, jnp.asarray(x_host)))

    # Packed-dtype path (bf16 -> 16-row sublane pack), 2-D, lane dim = 256.
    xb = jax.random.normal(jax.random.PRNGKey(1), (32, 256), dtype=jnp.float32).astype(jnp.bfloat16)
    xb_host = jax.device_get(xb)
    yb = jax.block_until_ready(pallas_identity(xb, force_kernel=True))
    assert yb.shape == xb_host.shape and yb.dtype == jnp.bfloat16
    assert bool(jnp.all(yb == jnp.asarray(xb_host)))

    # Small-input short-circuit (no kernel launch) through the model forward.
    xs = jax.random.normal(jax.random.PRNGKey(2), (8, 32), dtype=jnp.float32)
    ys = jax.block_until_ready(model(xs))
    assert bool(jnp.allclose(ys, xs))

    print("KERNEL_OK")
</pallas_src>

<mosaic_0001>
module attributes {stable_mosaic.version = 11 : i64} {
  func.func @_copy_kernel(%arg0: i32, %arg1: memref<128x32xf32, #tpu.memory_space<vmem>>, %arg2: memref<128x32xf32, #tpu.memory_space<vmem>>) attributes {dimension_semantics = [#tpu.dimension_semantics<parallel>], iteration_bounds = array<i64: 1>, scalar_prefetch = 0 : i64, scratch_operands = 0 : i64, tpu.core_type = #tpu.core_type<tc>, window_params = [{transform_indices = @transform_0, window_bounds = array<i64: 128, 32>}, {transform_indices = @transform_1, window_bounds = array<i64: 128, 32>}]} {
    %c0 = arith.constant 0 : index
    %c0_0 = arith.constant 0 : index
    %0 = vector.load %arg1[%c0, %c0_0] : memref<128x32xf32, #tpu.memory_space<vmem>>, vector<128x32xf32>
    %c0_1 = arith.constant 0 : index
    %c0_2 = arith.constant 0 : index
    %1 = vector.load %arg2[%c0_1, %c0_2] : memref<128x32xf32, #tpu.memory_space<vmem>>, vector<128x32xf32>
    tpu.vector_store %arg2[%c0_1, %c0_2], %0 {strides = array<i32>} : memref<128x32xf32, #tpu.memory_space<vmem>>, vector<128x32xf32>,
    return
  }
  func.func @transform_0(%arg0: i32) -> (i32, i32) {
    %c0_i32 = arith.constant 0 : i32
    %c0_i32_0 = arith.constant 0 : i32
    return %arg0, %c0_i32 : i32, i32
  }
  func.func @transform_1(%arg0: i32) -> (i32, i32) {
    %c0_i32 = arith.constant 0 : i32
    %c0_i32_0 = arith.constant 0 : i32
    return %arg0, %c0_i32 : i32, i32
  }
}

</mosaic_0001>

<llo_original>
// kernel: tpu_custom_call.1
$region0: #{tpu_custom_call.1}
  #allocation0 [shape = 'u32[]', space=smem, size = 0x4, offset = 0x4, fixed_abs, tag = 'smem constant byte address 0x4 - core index']
  #allocation1 [shape = 'u32[144,128]{1,0:T(1,128)}', space=vmem, size = 0x12000, scoped, tag = 'internal scratch']
  %s0 = inlined_call_operand.vmem [shape: f32[128,32], index: 0, kind: input, shape index: {}]
  %s1 = inlined_call_operand.vmem [shape: f32[128,32], index: 1, kind: output, shape index: {}]
  %s2 = sld [smem:[#allocation0]]
  $region14: #{tpu_custom_call.1} parent=0
    _
  %s4 = ssub.s32 1, %s2
  %s5 = scalar_select 0, %s4, %s2
  // Predicated region
  $region2: #{tpu_custom_call.1} parent=0 // pred_check
    _
  $region3: #{tpu_custom_call.1} parent=0 // pred_check_branch
    %7 = sbr.rel (0) target = $region5
  $region4: #{tpu_custom_call.1} parent=0 // pred_region
    _
  $region5: #{tpu_custom_call.1} parent=0 // pred_fallthru
    _
  %v8 = vld [vmem:[%s0] sm:$0xff]
  %v9 = vld [vmem:[%s0 + $0x8] sm:$0xff]
  %v10 = vld [vmem:[%s0 + $0x10] sm:$0xff]
  %v11 = vld [vmem:[%s0 + $0x18] sm:$0xff]
  %v12 = vld [vmem:[%s0 + $0x20] sm:$0xff]
  %v13 = vld [vmem:[%s0 + $0x28] sm:$0xff]
  %v14 = vld [vmem:[%s0 + $0x30] sm:$0xff]
  %v15 = vld [vmem:[%s0 + $0x38] sm:$0xff]
  %v16 = vld [vmem:[%s0 + $0x40] sm:$0xff]
  %v17 = vld [vmem:[%s0 + $0x48] sm:$0xff]
  %v18 = vld [vmem:[%s0 + $0x50] sm:$0xff]
  %v19 = vld [vmem:[%s0 + $0x58] sm:$0xff]
  %v20 = vld [vmem:[%s0 + $0x60] sm:$0xff]
  %v21 = vld [vmem:[%s0 + $0x68] sm:$0xff]
  %v22 = vld [vmem:[%s0 + $0x70] sm:$0xff]
  %v23 = vld [vmem:[%s0 + $0x78] sm:$0xff]
  %vm24 = vcmask 261120
  %25 = vst.msk [vmem:[%s1] sm:$0xff] %vm24, %v8
  %26 = vst.msk [vmem:[%s1 + $0x8] sm:$0xff] %vm24, %v9
  %27 = vst.msk [vmem:[%s1 + $0x10] sm:$0xff] %vm24, %v10
  %28 = vst.msk [vmem:[%s1 + $0x18] sm:$0xff] %vm24, %v11
  %29 = vst.msk [vmem:[%s1 + $0x20] sm:$0xff] %vm24, %v12
  %30 = vst.msk [vmem:[%s1 + $0x28] sm:$0xff] %vm24, %v13
  %31 = vst.msk [vmem:[%s1 + $0x30] sm:$0xff] %vm24, %v14
  %32 = vst.msk [vmem:[%s1 + $0x38] sm:$0xff] %vm24, %v15
  %33 = vst.msk [vmem:[%s1 + $0x40] sm:$0xff] %vm24, %v16
  %34 = vst.msk [vmem:[%s1 + $0x48] sm:$0xff] %vm24, %v17
  %35 = vst.msk [vmem:[%s1 + $0x50] sm:$0xff] %vm24, %v18
  %36 = vst.msk [vmem:[%s1 + $0x58] sm:$0xff] %vm24, %v19
  %37 = vst.msk [vmem:[%s1 + $0x60] sm:$0xff] %vm24, %v20
  %38 = vst.msk [vmem:[%s1 + $0x68] sm:$0xff] %vm24, %v21
  %39 = vst.msk [vmem:[%s1 + $0x70] sm:$0xff] %vm24, %v22
  %40 = vst.msk [vmem:[%s1 + $0x78] sm:$0xff] %vm24, %v23
  // Predicated region
  $region6: #{tpu_custom_call.1} parent=0 // pred_check
    _
  $region7: #{tpu_custom_call.1} parent=0 // pred_check_branch
    %42 = sbr.rel (0) target = $region9
  $region8: #{tpu_custom_call.1} parent=0 // pred_region
    _
  $region9: #{tpu_custom_call.1} parent=0 // pred_fallthru
    _
  // Predicated region
  $region10: #{tpu_custom_call.1} parent=0 // pred_check
    _
  $region11: #{tpu_custom_call.1} parent=0 // pred_check_branch
    %44 = sbr.rel (0) target = $region13
  $region12: #{tpu_custom_call.1} parent=0 // pred_region
    _
  $region13: #{tpu_custom_call.1} parent=0 // pred_fallthru
    _

</llo_original>
